<compile_context>
chip_gen: v5e
topology: v5e:2x2
jax: 0.10.0
libtpu: 0.0.40
codegen_flags: <defaults>
</compile_context>

<pallas_src>
import jax
import jax.numpy as jnp
from jax import lax
from jax.experimental import pallas as pl
from jax.experimental.pallas import tpu as pltpu


def rise_kernel(m_ref, y_ref, b_ref, sal_ref):
    """One grid step over a tile of masks.

    m_ref : (tile_n, HW) bf16  mask tile (the only large HBM stream)
    y_ref : (HW, T)      bf16  inv_scale * (x @ w_sel)        -- grid-invariant
    b_ref : (1, T)       f32   inv_scale * HW * bias[target]  -- grid-invariant
    sal   : (T, HW)      f32   resident accumulator (one slab per outer split)
    """
    i = pl.program_id(1)

    @pl.when(i == 0)
    def _init():
        sal_ref[...] = jnp.zeros_like(sal_ref)

    m = m_ref[...]                                            # bf16, straight to MXU
    # p[n, t] = inv_scale * model(masks*x)[n, target_t].sum(-1).sum(-1)
    #         = sum_hw m[n,hw] * y[hw,t] + b[t]    (exact for the 1x1-conv model)
    p = jnp.dot(m, y_ref[...], preferred_element_type=jnp.float32) + b_ref[...]
    # sal[t, hw] += sum_n p[n, t] * m[n, hw]   (contract the tile_n axis)
    sal_ref[...] += lax.dot_general(p.astype(jnp.bfloat16), m,
                                    (((0,), (0,)), ((), ())),
                                    preferred_element_type=jnp.float32)


def _round_up(x, m):
    return -(-x // m) * m


def _padded_vmem_bytes(shape, dtype):
    """VMEM bytes of one buffer including sublane / 128-lane padding."""
    item = jnp.dtype(dtype).itemsize
    sub = {4: 8, 2: 16, 1: 32}[item]
    rows = 1
    for d in shape[:-1]:
        rows *= int(d)
    cols = int(shape[-1])
    return _round_up(max(rows, 1), sub) * _round_up(cols, 128) * item


def _usable_vmem_bytes():
    # ~56 MiB usable on v7x (64 MiB / TC), ~112 MiB on v5e/v6e (128 MiB).
    try:
        cap = int(pltpu.get_tpu_info().vmem_capacity_bytes)
    except Exception:
        cap = 64 * 2**20  # conservative fallback (v7x per-core size)
    return cap * 7 // 8


def _largest_mult16_divisor(n, cap):
    best, d = 0, 16
    while d <= min(n, cap):
        if n % d == 0:
            best = d
        d += 16
    return best


def rise_forward(x, masks, conv_w, conv_b, target, p1):
    """x: (1,C,H,W) NCHW, masks: (N,1,H,W), conv_w: (CLS,C,1,1), conv_b: (CLS,)."""
    if isinstance(target, int):
        target = [target]
    target = list(target)
    N = masks.shape[0]
    _, C, H, W = x.shape
    HW = H * W
    T = len(target)

    inv_scale = 1.0 / (float(N) * float(p1))

    # Fold class selection + 1x1-conv "model" + /N/p1 scaling in the wrapper
    # (grid-invariant and tiny): y[hw, t] = inv_scale * sum_c x[hw, c] * w[t, c].
    t_idx = jnp.asarray(target, dtype=jnp.int32)
    w_sel = conv_w.reshape(conv_w.shape[0], C)[t_idx]            # (T, C)
    x2 = jnp.transpose(x.reshape(C, HW)).astype(jnp.float32)     # (HW, C)
    y_bf = ((x2 @ jnp.transpose(w_sel).astype(jnp.float32)) * inv_scale
            ).astype(jnp.bfloat16)                               # (HW, T)
    b2 = (conv_b[t_idx].astype(jnp.float32) * (HW * inv_scale)).reshape(1, T)

    # Masks are streamed as-is in bf16; keep them stored in bf16 upstream so
    # there is no standalone N*HW f32->bf16 HBM pass before the kernel.
    m2 = masks.reshape(N, HW)
    if m2.dtype != jnp.bfloat16:
        m2 = m2.astype(jnp.bfloat16)  # TODO(synk): store masks as bf16/int8 at generation time

    # ---- tiling / VMEM accounting (sublane + 128-lane padding included) ----
    usable = _usable_vmem_bytes()
    fixed = (2 * _padded_vmem_bytes((HW, T), jnp.bfloat16)       # y (worst-case 2 buffers)
             + 2 * _padded_vmem_bytes((1, T), jnp.float32)       # bias
             + 2 * _padded_vmem_bytes((T, HW), jnp.float32))     # resident output slab
    mask_row_bytes = _round_up(HW, 128) * 2                      # bf16 mask row, lane-padded
    budget = max(usable - fixed - (4 << 20), 2 * 16 * mask_row_bytes)
    tile_cap = max(16, (budget // (2 * mask_row_bytes)) // 16 * 16)

    # Split N across both TensorCores on v7x (whole masks per core, so
    # semantics are preserved); on 1-TC chips this is a cheap serial loop.
    num_splits = 2 if N % 32 == 0 else 1
    tile_n = _largest_mult16_divisor(N // num_splits, tile_cap)
    if tile_n == 0:
        # Awkward N: fall back to one full-extent block (always a legal tiling).
        # TODO(synk): pad N to a multiple of 16 upstream for very large awkward N.
        num_splits, tile_n = 1, N
    steps = N // (num_splits * tile_n)

    footprint = fixed + 2 * _padded_vmem_bytes((tile_n, HW), jnp.bfloat16)
    vmem_limit = int(min(usable, max(footprint + (4 << 20), 16 << 20)))

    cost = pl.CostEstimate(
        flops=4 * T * N * HW,
        transcendentals=0,
        bytes_accessed=N * HW * 2 + HW * T * 2 + num_splits * T * HW * 4)

    sal = pl.pallas_call(
        rise_kernel,
        out_shape=jax.ShapeDtypeStruct((num_splits, T, HW), jnp.float32),
        grid_spec=pltpu.PrefetchScalarGridSpec(
            num_scalar_prefetch=0,
            grid=(num_splits, steps),
            in_specs=[
                pl.BlockSpec((tile_n, HW), lambda c, i: (c * steps + i, 0)),  # masks
                pl.BlockSpec((HW, T), lambda c, i: (0, 0)),                   # scaled scores
                pl.BlockSpec((1, T), lambda c, i: (0, 0)),                    # scaled bias
            ],
            out_specs=pl.BlockSpec((None, T, HW), lambda c, i: (c, 0, 0)),    # per-split slab
        ),
        compiler_params=pltpu.CompilerParams(
            dimension_semantics=("parallel", "arbitrary"),
            vmem_limit_bytes=vmem_limit),
        cost_estimate=cost,
    )(m2, y_bf, b2)

    # Combine the per-TensorCore partial saliencies (tiny XLA add).
    sal = sal.sum(axis=0)
    return sal.reshape(T, 1, H, W)


if __name__ == "__main__":
    key = jax.random.PRNGKey(0)
    k1, k2, k3, k4 = jax.random.split(key, 4)

    N, C, H, W = 64, 8, 16, 16      # masks, channels, spatial
    CLS = 8                         # synthetic model's number of classes
    target = [1, 3]                 # class list -> CL = 2
    p1 = 0.5

    x = jax.random.normal(k1, (1, C, H, W), dtype=jnp.float32)
    # RISE stores its masks once; keep them bf16 so the kernel streams them
    # directly with no standalone f32->bf16 HBM pass.
    masks = jax.random.uniform(k2, (N, 1, H, W), dtype=jnp.float32).astype(jnp.bfloat16)
    conv_w = jax.random.normal(k3, (CLS, C, 1, 1), dtype=jnp.float32) * 0.1
    conv_b = jax.random.normal(k4, (CLS,), dtype=jnp.float32) * 0.01

    sal = rise_forward(x, masks, conv_w, conv_b, target, p1)
    sal = jax.block_until_ready(sal)

    # Plain-JAX reference of the literal PyTorch forward (f32 math on the
    # same bf16-stored masks).
    HW = H * W
    masks_f32 = masks.astype(jnp.float32)
    stack = masks_f32 * x                                        # (N,C,H,W)
    logits = jnp.einsum('oc,nchw->nohw', conv_w[:, :, 0, 0], stack) \
        + conv_b[None, :, None, None]
    p_ref = logits[:, jnp.asarray(target)].sum(-1).sum(-1)       # (N, T)
    sal_ref = (p_ref.T @ masks_f32.reshape(N, HW)) / N / p1
    sal_ref = sal_ref.reshape(len(target), 1, H, W)

    assert sal.shape == (len(target), 1, H, W)
    err = float(jnp.max(jnp.abs(sal - sal_ref)))
    assert jnp.allclose(sal, sal_ref, rtol=2e-2, atol=2e-2), f"max abs err = {err}"
    print("KERNEL_OK")
</pallas_src>

<mosaic_0001>
module attributes {stable_mosaic.version = 11 : i64} {
  func.func @rise_kernel(%arg0: i32, %arg1: i32, %arg2: memref<32x256xbf16, #tpu.memory_space<vmem>>, %arg3: memref<256x2xbf16, #tpu.memory_space<vmem>>, %arg4: memref<1x2xf32, #tpu.memory_space<vmem>>, %arg5: memref<1x2x256xf32, #tpu.memory_space<vmem>>) attributes {dimension_semantics = [#tpu.dimension_semantics<parallel>, #tpu.dimension_semantics<arbitrary>], iteration_bounds = array<i64: 2, 1>, scalar_prefetch = 0 : i64, scratch_operands = 0 : i64, tpu.core_type = #tpu.core_type<tc>, window_params = [{transform_indices = @transform_0, window_bounds = array<i64: 32, 256>}, {pipeline_mode = #tpu.pipeline_mode<synchronous>, transform_indices = @transform_1, window_bounds = array<i64: 256, 2>}, {pipeline_mode = #tpu.pipeline_mode<synchronous>, transform_indices = @transform_2, window_bounds = array<i64: 1, 2>}, {transform_indices = @transform_3, window_bounds = array<i64: 1, 2, 256>}]} {
    %c0_i32 = arith.constant 0 : i32
    %0 = arith.cmpi eq, %arg1, %c0_i32 : i32
    %1 = arith.extui %0 : i1 to i32
    %c0_i32_0 = arith.constant 0 : i32
    %2 = arith.cmpi ne, %1, %c0_i32_0 : i32
    scf.if %2 {
      %cst_13 = arith.constant 0.000000e+00 : f32
      %17 = vector.broadcast %cst_13 : f32 to vector<2x256xf32>
      %c0_14 = arith.constant 0 : index
      %c0_15 = arith.constant 0 : index
      %c0_16 = arith.constant 0 : index
      %18 = vector.load %arg5[%c0_14, %c0_15, %c0_16] : memref<1x2x256xf32, #tpu.memory_space<vmem>>, vector<1x2x256xf32>
      %19 = vector.shape_cast %18 : vector<1x2x256xf32> to vector<2x256xf32>
      %20 = vector.shape_cast %17 : vector<2x256xf32> to vector<1x2x256xf32>
      tpu.vector_store %arg5[%c0_14, %c0_15, %c0_16], %20 {strides = array<i32>} : memref<1x2x256xf32, #tpu.memory_space<vmem>>, vector<1x2x256xf32>,
    } else {
    }
    %c0 = arith.constant 0 : index
    %c0_1 = arith.constant 0 : index
    %3 = vector.load %arg2[%c0, %c0_1] : memref<32x256xbf16, #tpu.memory_space<vmem>>, vector<32x256xbf16>
    %c0_2 = arith.constant 0 : index
    %c0_3 = arith.constant 0 : index
    %4 = vector.load %arg3[%c0_2, %c0_3] : memref<256x2xbf16, #tpu.memory_space<vmem>>, vector<256x2xbf16>
    %cst = arith.constant dense<0.000000e+00> : vector<32x2xf32>
    %5 = tpu.matmul %3, %4, %cst {dimension_numbers = #tpu.dot_dimension_numbers<[1], [0], [0], [1], [0, 0, 1, 1], [], []>} : vector<32x256xbf16>, vector<256x2xbf16>, vector<32x2xf32> -> vector<32x2xf32>
    %c0_4 = arith.constant 0 : index
    %c0_5 = arith.constant 0 : index
    %6 = vector.load %arg4[%c0_4, %c0_5] : memref<1x2xf32, #tpu.memory_space<vmem>>, vector<1x2xf32>
    %7 = vector.broadcast %6 : vector<1x2xf32> to vector<32x2xf32>
    %8 = arith.addf %5, %7 : vector<32x2xf32>
    %c0_6 = arith.constant 0 : index
    %c0_7 = arith.constant 0 : index
    %c0_8 = arith.constant 0 : index
    %9 = vector.load %arg5[%c0_6, %c0_7, %c0_8] : memref<1x2x256xf32, #tpu.memory_space<vmem>>, vector<1x2x256xf32>
    %10 = vector.shape_cast %9 : vector<1x2x256xf32> to vector<2x256xf32>
    %11 = arith.truncf %8 : vector<32x2xf32> to vector<32x2xbf16>
    %cst_9 = arith.constant dense<0.000000e+00> : vector<2x256xf32>
    %12 = tpu.matmul %11, %3, %cst_9 {dimension_numbers = #tpu.dot_dimension_numbers<[0], [0], [1], [1], [0, 1, 1, 1], [], []>} : vector<32x2xbf16>, vector<32x256xbf16>, vector<2x256xf32> -> vector<2x256xf32>
    %13 = arith.addf %10, %12 : vector<2x256xf32>
    %c0_10 = arith.constant 0 : index
    %c0_11 = arith.constant 0 : index
    %c0_12 = arith.constant 0 : index
    %14 = vector.load %arg5[%c0_10, %c0_11, %c0_12] : memref<1x2x256xf32, #tpu.memory_space<vmem>>, vector<1x2x256xf32>
    %15 = vector.shape_cast %14 : vector<1x2x256xf32> to vector<2x256xf32>
    %16 = vector.shape_cast %13 : vector<2x256xf32> to vector<1x2x256xf32>
    tpu.vector_store %arg5[%c0_10, %c0_11, %c0_12], %16 {strides = array<i32>} : memref<1x2x256xf32, #tpu.memory_space<vmem>>, vector<1x2x256xf32>,
    return
  }
  func.func @transform_0(%arg0: i32, %arg1: i32) -> (i32, i32) {
    %c1_i32 = arith.constant 1 : i32
    %0 = arith.muli %arg0, %c1_i32 : i32
    %1 = arith.addi %0, %arg1 : i32
    %c0_i32 = arith.constant 0 : i32
    %c0_i32_0 = arith.constant 0 : i32
    return %1, %c0_i32 : i32, i32
  }
  func.func @transform_1(%arg0: i32, %arg1: i32) -> (i32, i32) {
    %c0_i32 = arith.constant 0 : i32
    %c0_i32_0 = arith.constant 0 : i32
    %c0_i32_1 = arith.constant 0 : i32
    return %c0_i32, %c0_i32_0 : i32, i32
  }
  func.func @transform_2(%arg0: i32, %arg1: i32) -> (i32, i32) {
    %c0_i32 = arith.constant 0 : i32
    %c0_i32_0 = arith.constant 0 : i32
    %c0_i32_1 = arith.constant 0 : i32
    return %c0_i32, %c0_i32_0 : i32, i32
  }
  func.func @transform_3(%arg0: i32, %arg1: i32) -> (i32, i32, i32) {
    %c0_i32 = arith.constant 0 : i32
    %c0_i32_0 = arith.constant 0 : i32
    %c0_i32_1 = arith.constant 0 : i32
    return %arg0, %c0_i32, %c0_i32_0 : i32, i32, i32
  }
}

</mosaic_0001>

<llo_original>
// kernel: tpu_custom_call.1
$region0: #{tpu_custom_call.1}
  #allocation0 [shape = 'u32[]', space=smem, size = 0x4, offset = 0x4, fixed_abs, tag = 'smem constant byte address 0x4 - core index']
  #allocation1 [shape = 'u32[72,128]{1,0:T(1,128)}', space=vmem, size = 0x9000, scoped, tag = 'internal scratch']
  %s0 = inlined_call_operand.vmem [shape: bf16[64,256], index: 0, kind: input, shape index: {}]
  %s1 = inlined_call_operand.vmem [shape: bf16[256,2], index: 1, kind: input, shape index: {}]
  %s2 = inlined_call_operand.vmem [shape: f32[1,2], index: 2, kind: input, shape index: {}]
  %s3 = inlined_call_operand.hbm [shape: f32[2,2,256], index: 3, kind: output, shape index: {}]
  %s4 = sld [smem:[#allocation0]]
  $region49: #{tpu_custom_call.1} parent=0
    _
  %s6 = ssub.s32 1, %s4
  %s7 = scalar_select 0, %s6, %s4
  $region1: #{tpu_custom_call.1} parent=0
    #allocation2 [shape = 'u8[4096]{0}', space=vmem, size = 0x1000, scoped, tag = 'output window, operand 0']
    #allocation3 [shape = 's32[2]{0}', space=sflag, size = 0x8, scoped, tag = 'scoped memory for tpu_custom_call.1']
    %8 = vsyncpa [#allocation3], 0
    %s9 = scalar_lea.sflag [#allocation3], 1
    %10 = vsyncpa %s9, 0
    loop: start=0, step=1, limit=4
    $region2: #{tpu_custom_call.1} parent=1 // loop_pre_header
      _
    $region3: #{tpu_custom_call.1} parent=1 // loop_header
      %s12 = sphi 0, %s16
      %p13 = scmp.ge.s32.totalorder %s12, 4
      %s19 = sphi 0, %s31
      %s20 = sphi 0, %s27
      %s21 = sphi 0, %s19
      %s22 = sphi 0, %s20
      %s23 = sphi 0, %s21
      %s24 = sphi 0, %s22
      %s36 = sphi 0, %s38
      %s39 = sphi 0, %s36
      %s40 = sphi 0, %s39
      %s56 = sphi 0, %s40
      %s60 = sphi 0, %s60
      %s62 = sphi 0, %s60
      %s63 = sphi 0, %s62
      %s77 = sphi 0, %s63
      %s81 = sphi 0, %s81
      %s83 = sphi 0, %s81
      %s84 = sphi 0, %s83
      %s98 = sphi 0, %s84
      %s104 = sphi 0, %s106
      %s107 = sphi 0, %s104
      %s108 = sphi 0, %s107
      %s124 = sphi 0, %s108
    $region4: #{tpu_custom_call.1} parent=1 // loop_header_branch
      %15 = sbr.rel (%p13) target = $region8
    $region5: #{tpu_custom_call.1} parent=1 // loop_body
      %s17 = ssub.s32 %s12, 1
      %s18 = ssub.s32 %s12, 2
      %s25 = sadd.s32 1, %s20
      %p26 = scmp.ge.s32.totalorder %s25, 1
      %s27 = scalar_select %p26, 0, %s25
      %s28 = sadd.s32 1, %s19
      %s29 = scalar_select %p26, %s28, %s19
      %p30 = scmp.ge.s32.totalorder %s29, 2
      %s31 = scalar_select %p30, 0, %s29
      %s32 = sadd.s32 %s19, %s20
      %s33 = sadd.s32 %s31, %s27
      %s34 = ssub.s32 %s32, %s33
      %p35 = scmp.eq.s32.totalorder %s34, 0
      %s37 = sadd.s32 %s36, 1
      %s38 = scalar_select %p35, %s36, %s37
      %p41 = pneg %p35
      %p42 = scmp.eq.s32.totalorder %s12, 1
      %p43 = por %p41, %p42
      %p44 = scmp.ne.s32.totalorder %s36, %s39
      %p45 = scmp.eq.s32.totalorder %s12, 0
      %p46 = por %p44, %p45
      %p47 = scmp.ne.s32.totalorder %s36, %s39
      %p48 = scmp.eq.s32.totalorder %s17, 1
      %p49 = por %p47, %p48
      %p50 = scmp.ne.s32.totalorder %s39, %s40
      %p51 = scmp.eq.s32.totalorder %s17, 0
      %p52 = por %p50, %p51
      %p53 = scmp.ne.s32.totalorder %s39, %s40
      %p54 = scmp.eq.s32.totalorder %s18, 1
      %p55 = por %p53, %p54
      %p57 = scmp.ne.s32.totalorder %s40, %s56
      %p58 = scmp.eq.s32.totalorder %s18, 0
      %p59 = por %p57, %p58
      %s61 = sadd.s32 %s60, 1
      %p64 = scmp.eq.s32.totalorder %s12, 1
      %p65 = scmp.ne.s32.totalorder %s60, %s62
      %p66 = scmp.eq.s32.totalorder %s12, 0
      %p67 = por %p65, %p66
      %p68 = scmp.ne.s32.totalorder %s60, %s62
      %p69 = scmp.eq.s32.totalorder %s17, 1
      %p70 = por %p68, %p69
      %p71 = scmp.ne.s32.totalorder %s62, %s63
      %p72 = scmp.eq.s32.totalorder %s17, 0
      %p73 = por %p71, %p72
      %p74 = scmp.ne.s32.totalorder %s62, %s63
      %p75 = scmp.eq.s32.totalorder %s18, 1
      %p76 = por %p74, %p75
      %p78 = scmp.ne.s32.totalorder %s63, %s77
      %p79 = scmp.eq.s32.totalorder %s18, 0
      %p80 = por %p78, %p79
      %s82 = sadd.s32 %s81, 1
      %p85 = scmp.eq.s32.totalorder %s12, 1
      %p86 = scmp.ne.s32.totalorder %s81, %s83
      %p87 = scmp.eq.s32.totalorder %s12, 0
      %p88 = por %p86, %p87
      %p89 = scmp.ne.s32.totalorder %s81, %s83
      %p90 = scmp.eq.s32.totalorder %s17, 1
      %p91 = por %p89, %p90
      %p92 = scmp.ne.s32.totalorder %s83, %s84
      %p93 = scmp.eq.s32.totalorder %s17, 0
      %p94 = por %p92, %p93
      %p95 = scmp.ne.s32.totalorder %s83, %s84
      %p96 = scmp.eq.s32.totalorder %s18, 1
      %p97 = por %p95, %p96
      %p99 = scmp.ne.s32.totalorder %s84, %s98
      %p100 = scmp.eq.s32.totalorder %s18, 0
      %p101 = por %p99, %p100
      %s102 = ssub.s32 %s19, %s31
      %p103 = scmp.eq.s32.totalorder %s102, 0
      %s105 = sadd.s32 %s104, 1
      %s106 = scalar_select %p103, %s104, %s105
      %p109 = pneg %p103
      %p110 = scmp.eq.s32.totalorder %s12, 1
      %p111 = por %p109, %p110
      %p112 = scmp.ne.s32.totalorder %s104, %s107
      %p113 = scmp.eq.s32.totalorder %s12, 0
      %p114 = por %p112, %p113
      %p115 = scmp.ne.s32.totalorder %s104, %s107
      %p116 = scmp.eq.s32.totalorder %s17, 1
      %p117 = por %p115, %p116
      %p118 = scmp.ne.s32.totalorder %s107, %s108
      %p119 = scmp.eq.s32.totalorder %s17, 0
      %p120 = por %p118, %p119
      %p121 = scmp.ne.s32.totalorder %s107, %s108
      %p122 = scmp.eq.s32.totalorder %s18, 1
      %p123 = por %p121, %p122
      %p125 = scmp.ne.s32.totalorder %s108, %s124
      %p126 = scmp.eq.s32.totalorder %s18, 0
      %p127 = por %p125, %p126
      %p128 = scmp.le.s32.totalorder 1, %s12
      %p129 = scmp.lt.s32.totalorder %s12, 3
      %p130 = pnand %p128, %p129
      %p131 = pneg %p130
      // Predicated region
      $region9: #{tpu_custom_call.1} parent=5 // pred_check
        _
      $region10: #{tpu_custom_call.1} parent=5 // pred_check_branch
        %133 = sbr.rel (%p130) target = $region12
      $region11: #{tpu_custom_call.1} parent=5 // pred_region
        %s134 = ssub.s32 %s12, 1
        // Predicated region
        $region13: #{tpu_custom_call.1} parent=11 // pred_check
          %p135 = pneg %p73
        $region14: #{tpu_custom_call.1} parent=11 // pred_check_branch
          %137 = sbr.rel (%p135) target = $region16
        $region15: #{tpu_custom_call.1} parent=11 // pred_region
          _
        $region16: #{tpu_custom_call.1} parent=11 // pred_fallthru
          _
        // Predicated region
        $region17: #{tpu_custom_call.1} parent=11 // pred_check
          %p138 = pneg %p94
        $region18: #{tpu_custom_call.1} parent=11 // pred_check_branch
          %140 = sbr.rel (%p138) target = $region20
        $region19: #{tpu_custom_call.1} parent=11 // pred_region
          _
        $region20: #{tpu_custom_call.1} parent=11 // pred_fallthru
          _
      $region12: #{tpu_custom_call.1} parent=5 // pred_fallthru
        _
      %p141 = scmp.lt.s32.totalorder %s12, 2
      // Predicated region
      $region21: #{tpu_custom_call.1} parent=5 // pred_check
        %p142 = pneg %p141
      $region22: #{tpu_custom_call.1} parent=5 // pred_check_branch
        %144 = sbr.rel (%p142) target = $region24
      $region23: #{tpu_custom_call.1} parent=5 // pred_region
        // Predicated region
        $region25: #{tpu_custom_call.1} parent=23 // pred_check
          %p145 = pneg %p46
        $region26: #{tpu_custom_call.1} parent=23 // pred_check_branch
          %147 = sbr.rel (%p145) target = $region28
        $region27: #{tpu_custom_call.1} parent=23 // pred_region
          %s148 = sadd.s32 %s19, %s20
          %s149 = smul.u32 4, %s148
          %p150 = scmp.lt.s32.totalorder %s149, 7
          %s151 = scalar_select %p150, %s149, 7
          %s152 = smul.addr %s151, 2
          %s153 = smul.addr %s152, 4
          %s154 = scalar_lea.vmem %s0, %s153
          %s155 = sadd.s32 %s19, %s20
          %s156 = smul.u32 4, %s155
        $region28: #{tpu_custom_call.1} parent=23 // pred_fallthru
          _
      $region24: #{tpu_custom_call.1} parent=5 // pred_fallthru
        _
      %p157 = scmp.le.s32.totalorder 1, %s12
      %p158 = scmp.lt.s32.totalorder %s12, 3
      %p159 = pnand %p157, %p158
      %p160 = pneg %p159
      // Predicated region
      $region29: #{tpu_custom_call.1} parent=5 // pred_check
        _
      $region30: #{tpu_custom_call.1} parent=5 // pred_check_branch
        %162 = sbr.rel (%p159) target = $region32
      $region31: #{tpu_custom_call.1} parent=5 // pred_region
        %s163 = ssub.s32 %s12, 1
        %s164 = sadd.s32 %s21, %s22
        %s165 = smul.u32 4, %s164
        %p166 = scmp.lt.s32.totalorder %s165, 7
        %s167 = scalar_select %p166, %s165, 7
        %s168 = smul.addr %s167, 2
        %s169 = smul.addr %s168, 4
        %s170 = scalar_lea.vmem %s0, %s169
        %p171 = pneg %p52
        %p172 = pneg %p49
        %p173 = pneg %p73
        %p174 = pneg %p70
        %p175 = pneg %p94
        %p176 = pneg %p91
        %p177 = pneg %p120
        %p178 = pneg %p117
        %s179 = sand.u32 %s107, 1
        %s180 = scalar_lea.sflag [#allocation3], %s179
        %s181 = sand.u32 %s107, 1
        %s182 = smul.addr %s181, 4
        %s183 = scalar_lea.vmem [#allocation2], %s182
        %s184 = sadd.s32 %s21, %s22
        %s185 = smul.u32 4, %s184
        %p186 = scmp.lt.s32.totalorder %s185, 7
        %s187 = scalar_select %p186, %s185, 7
        %s188 = smul.addr %s187, 2
        %s189 = smul.addr %s188, 4
        %s190 = scalar_lea.vmem %s0, %s189
        %s191 = sadd.s32 %s21, %s22
        %s192 = smul.u32 4, %s191
        %p194 = scmp.eq.s32.totalorder %s22, 0
        // Predicated region
        $region33: #{tpu_custom_call.1} parent=31 // pred_check
          %p195 = pneg %p194
        $region34: #{tpu_custom_call.1} parent=31 // pred_check_branch
          %197 = sbr.rel (%p195) target = $region36
        $region35: #{tpu_custom_call.1} parent=31 // pred_region
          %198 = vst [vmem:[%s183] sm:$0xf] 0.0
        $region36: #{tpu_custom_call.1} parent=31 // pred_fallthru
          _
        %v199 = vld [vmem:[%s190] sm:$0xff]
        %v200 = vld [vmem:[%s190 + $0x8] sm:$0xff]
        %v201 = vld [vmem:[%s190 + $0x10] sm:$0xff]
        %v202 = vld [vmem:[%s190 + $0x18] sm:$0xff]
        %v203 = vld [vmem:[%s1] sm:$0xf]
        %v204 = vld [vmem:[%s1 + $0x4] sm:$0xf]
        %v205 = vld [vmem:[%s1 + $0x8] sm:$0xf]
        %v206 = vld [vmem:[%s1 + $0xc] sm:$0xf]
        %v207 = vld [vmem:[%s1 + $0x10] sm:$0xf]
        %v208 = vld [vmem:[%s1 + $0x14] sm:$0xf]
        %v209 = vld [vmem:[%s1 + $0x18] sm:$0xf]
        %v210 = vld [vmem:[%s1 + $0x1c] sm:$0xf]
        %v211 = vld [vmem:[%s1 + $0x20] sm:$0xf]
        %v212 = vld [vmem:[%s1 + $0x24] sm:$0xf]
        %v213 = vld [vmem:[%s1 + $0x28] sm:$0xf]
        %v214 = vld [vmem:[%s1 + $0x2c] sm:$0xf]
        %v215 = vld [vmem:[%s1 + $0x30] sm:$0xf]
        %v216 = vld [vmem:[%s1 + $0x34] sm:$0xf]
        %v217 = vld [vmem:[%s1 + $0x38] sm:$0xf]
        %v218 = vld [vmem:[%s1 + $0x3c] sm:$0xf]
        %v219 = vld [vmem:[%s1 + $0x40] sm:$0xf]
        %v220 = vld [vmem:[%s1 + $0x44] sm:$0xf]
        %v221 = vld [vmem:[%s1 + $0x48] sm:$0xf]
        %v222 = vld [vmem:[%s1 + $0x4c] sm:$0xf]
        %v223 = vld [vmem:[%s1 + $0x50] sm:$0xf]
        %v224 = vld [vmem:[%s1 + $0x54] sm:$0xf]
        %v225 = vld [vmem:[%s1 + $0x58] sm:$0xf]
        %v226 = vld [vmem:[%s1 + $0x5c] sm:$0xf]
        %v227 = vld [vmem:[%s1 + $0x60] sm:$0xf]
        %v228 = vld [vmem:[%s1 + $0x64] sm:$0xf]
        %v229 = vld [vmem:[%s1 + $0x68] sm:$0xf]
        %v230 = vld [vmem:[%s1 + $0x6c] sm:$0xf]
        %v231 = vld [vmem:[%s1 + $0x70] sm:$0xf]
        %v232 = vld [vmem:[%s1 + $0x74] sm:$0xf]
        %v233 = vld [vmem:[%s1 + $0x78] sm:$0xf]
        %v234 = vld [vmem:[%s1 + $0x7c] sm:$0xf]
        %v235 = vld [vmem:[%s2] sm:$0x1]
        %v237 = vperm.slane %v235, 0
        %v243 = vunpack.c.l.b16 %v199
        %v244 = vunpack.c.h.b16 %v199
        %v245 = vunpack.c.l.b16 %v200
        %v246 = vunpack.c.h.b16 %v200
        %v247 = vunpack.c.l.b16 %v201
        %v248 = vunpack.c.h.b16 %v201
        %v249 = vunpack.c.l.b16 %v202
        %v250 = vunpack.c.h.b16 %v202
        %v251 = vpack.c.b16 %v245, %v243
        %v252 = vpack.c.b16 %v246, %v244
        %v253 = vpack.c.b16 %v249, %v247
        %v254 = vpack.c.b16 %v250, %v248
        %v291 = vunpack.c.l.b16 %v203
        %v292 = vunpack.c.l.b16 %v204
        %v293 = vunpack.c.l.b16 %v205
        %v294 = vunpack.c.l.b16 %v206
        %v295 = vunpack.c.l.b16 %v207
        %v296 = vunpack.c.l.b16 %v208
        %v297 = vunpack.c.l.b16 %v209
        %v298 = vunpack.c.l.b16 %v210
        %v299 = vunpack.c.l.b16 %v211
        %v300 = vunpack.c.l.b16 %v212
        %v301 = vunpack.c.l.b16 %v213
        %v302 = vunpack.c.l.b16 %v214
        %v303 = vunpack.c.l.b16 %v215
        %v304 = vunpack.c.l.b16 %v216
        %v305 = vunpack.c.l.b16 %v217
        %v306 = vunpack.c.l.b16 %v218
        %v307 = vunpack.c.l.b16 %v219
        %v308 = vunpack.c.l.b16 %v220
        %v309 = vunpack.c.l.b16 %v221
        %v310 = vunpack.c.l.b16 %v222
        %v311 = vunpack.c.l.b16 %v223
        %v312 = vunpack.c.l.b16 %v224
        %v313 = vunpack.c.l.b16 %v225
        %v314 = vunpack.c.l.b16 %v226
        %v315 = vunpack.c.l.b16 %v227
        %v316 = vunpack.c.l.b16 %v228
        %v317 = vunpack.c.l.b16 %v229
        %v318 = vunpack.c.l.b16 %v230
        %v319 = vunpack.c.l.b16 %v231
        %v320 = vunpack.c.l.b16 %v232
        %v321 = vunpack.c.l.b16 %v233
        %v322 = vunpack.c.l.b16 %v234
        %v323 = vpack.c.b16 %v292, %v291
        %v324 = vpack.c.b16 %v294, %v293
        %v325 = vpack.c.b16 %v296, %v295
        %v326 = vpack.c.b16 %v298, %v297
        %v327 = vpack.c.b16 %v300, %v299
        %v328 = vpack.c.b16 %v302, %v301
        %v329 = vpack.c.b16 %v304, %v303
        %v330 = vpack.c.b16 %v306, %v305
        %v331 = vpack.c.b16 %v308, %v307
        %v332 = vpack.c.b16 %v310, %v309
        %v333 = vpack.c.b16 %v312, %v311
        %v334 = vpack.c.b16 %v314, %v313
        %v335 = vpack.c.b16 %v316, %v315
        %v336 = vpack.c.b16 %v318, %v317
        %v337 = vpack.c.b16 %v320, %v319
        %v338 = vpack.c.b16 %v322, %v321
        %355 = vmatpush.bf16.msra.mxu0 %v330
        %356 = vmatpush.bf16.msra.mxu0 %v329
        %357 = vmatpush.bf16.msra.mxu0 %v328
        %358 = vmatpush.bf16.msra.mxu0 %v327
        %359 = vmatpush.bf16.msra.mxu0 %v326
        %360 = vmatpush.bf16.msra.mxu0 %v325
        %361 = vmatpush.bf16.msra.mxu0 %v324
        %362 = vmatpush.bf16.msra.mxu0 %v323
        %363 = vmatmul.bf16.gmra.mxu0 %v251
        %v364 = vpop.f32.mrf.mxu0
        %v365 = vadd.f32 %v237, %v364
        %v366 = vpop.f32.mrf.mxu0
        %v367 = vadd.f32 %v237, %v366
        %368 = vmatmul.bf16.gmra.mxu0 %v253
        %v369 = vpop.f32.mrf.mxu0
        %v370 = vadd.f32 %v237, %v369
        %v371 = vpop.f32.mrf.mxu0
        %v372 = vadd.f32 %v237, %v371
        %373 = vdwg.mxu0
        %374 = vmatpush.bf16.msra.mxu0 %v338
        %375 = vmatpush.bf16.msra.mxu0 %v337
        %376 = vmatpush.bf16.msra.mxu0 %v336
        %377 = vmatpush.bf16.msra.mxu0 %v335
        %378 = vmatpush.bf16.msra.mxu0 %v334
        %379 = vmatpush.bf16.msra.mxu0 %v333
        %380 = vmatpush.bf16.msra.mxu0 %v332
        %381 = vmatpush.bf16.msra.mxu0 %v331
        %382 = vmatmul.bf16.gmra.mxu0 %v252
        %v383 = vpop.f32.mrf.mxu0
        %v384 = vadd.f32 %v365, %v383
        %v385 = vpop.f32.mrf.mxu0
        %v386 = vadd.f32 %v367, %v385
        %387 = vmatmul.bf16.gmra.mxu0 %v254
        %v388 = vpop.f32.mrf.mxu0
        %v389 = vadd.f32 %v370, %v388
        %v390 = vpop.f32.mrf.mxu0
        %v391 = vadd.f32 %v372, %v390
        %392 = vdwg.mxu0
        %v393 = vld [vmem:[%s183] sm:$0xf]
        %v394 = vpack.c.bf16 %v386, %v384
        %v395 = vpack.c.bf16 %v391, %v389
        %396 = vxpose.xlu0.c.b16.start [1/8] %v394, 128
        %397 = vxpose.xlu0.c.b16.cont [2/8] %v395, 128
        %398 = vxpose.xlu0.c.b16.cont [3/8] 0, 128
        %399 = vxpose.xlu0.c.b16.cont [4/8] 0, 128
        %400 = vxpose.xlu0.c.b16.cont [5/8] 0, 128
        %401 = vxpose.xlu0.c.b16.cont [6/8] 0, 128
        %402 = vxpose.xlu0.c.b16.cont [7/8] 0, 128
        %403 = vxpose.xlu0.c.b16.end [8/8] 0, 128
        %v404 = vpop.trf.xlu0
        %v405 = vpop.trf.xlu0
        %v406 = vpop.trf.xlu0
        %v407 = vpop.trf.xlu0
        %v408 = vpop.trf.xlu0
        %v409 = vpop.trf.xlu0
        %v410 = vpop.trf.xlu0
        %v411 = vpop.trf.xlu0
        %vm412 = vcmask 261120
        %v414 = vsel %vm412, %v404, 0
        %416 = vmatpush.bf16.msra.mxu0 0
        %417 = vmatpush.bf16.msra.mxu0 0
        %418 = vmatpush.bf16.msra.mxu0 0
        %419 = vmatpush.bf16.msra.mxu0 0
        %420 = vmatpush.bf16.msra.mxu0 0
        %421 = vmatpush.bf16.msra.mxu0 0
        %422 = vmatpush.bf16.msra.mxu0 %v253
        %423 = vmatpush.bf16.msra.mxu0 %v251
        %424 = vmatmul.bf16.gmra.mxu0 %v414
        %v425 = vpop.f32.mrf.mxu0
        %v426 = vadd.f32 0.0, %v425
        %v427 = vpop.f32.mrf.mxu0
        %428 = vdwg.mxu0
        %429 = vmatpush.bf16.msra.mxu0 0
        %430 = vmatpush.bf16.msra.mxu0 0
        %431 = vmatpush.bf16.msra.mxu0 0
        %432 = vmatpush.bf16.msra.mxu0 0
        %433 = vmatpush.bf16.msra.mxu0 0
        %434 = vmatpush.bf16.msra.mxu0 0
        %435 = vmatpush.bf16.msra.mxu0 %v254
        %436 = vmatpush.bf16.msra.mxu0 %v252
        %437 = vmatmul.bf16.gmra.mxu0 %v414
        %v438 = vpop.f32.mrf.mxu0
        %v439 = vadd.f32 0.0, %v438
        %v440 = vpop.f32.mrf.mxu0
        %441 = vdwg.mxu0
        %v444 = vrot.slane %v439, 6
        %vm445 = vcmask 1041408
        %v446 = vsel %vm445, %v426, %v444
        %v448 = vadd.f32 %v393, %v446
        %449 = vst [vmem:[%s183] sm:$0xf] %v448
        %s450 = sand.u32 %s107, 1
        %s451 = scalar_lea.sflag [#allocation3], %s450
        %s452 = sand.u32 %s107, 1
        %s453 = smul.addr %s452, 4
        %s454 = scalar_lea.vmem [#allocation2], %s453
        // Predicated region
        $region37: #{tpu_custom_call.1} parent=31 // pred_check
          %p455 = pneg %p117
        $region38: #{tpu_custom_call.1} parent=31 // pred_check_branch
          %457 = sbr.rel (%p455) target = $region40
        $region39: #{tpu_custom_call.1} parent=31 // pred_region
          %459 = vsyncadd %s451, 0
          %s460 = smul.addr %s21, 2
          %s461 = smul.addr %s460, 2
          %s462 = scalar_lea.hbm %s3, %s461
          %s464 = sshll.u32 %s454, 4
          %s465 = int_to_ptr.vmem [resolvable:$true] %s464
          %s466 = sshll.u32 %s462, 4
          %s467 = int_to_ptr.hbm [resolvable:$true] %s466
          %469 = dma.vmem_to_hbm [thread:$0]  %s465, 64, %s467, %s451
        $region40: #{tpu_custom_call.1} parent=31 // pred_fallthru
          _
      $region32: #{tpu_custom_call.1} parent=5 // pred_fallthru
        _
      %p470 = scmp.le.s32.totalorder 2, %s12
      // Predicated region
      $region41: #{tpu_custom_call.1} parent=5 // pred_check
        %p471 = pneg %p470
      $region42: #{tpu_custom_call.1} parent=5 // pred_check_branch
        %473 = sbr.rel (%p471) target = $region44
      $region43: #{tpu_custom_call.1} parent=5 // pred_region
        %s474 = ssub.s32 %s12, 2
        // Predicated region
        $region45: #{tpu_custom_call.1} parent=43 // pred_check
          %p475 = pneg %p123
        $region46: #{tpu_custom_call.1} parent=43 // pred_check_branch
          %477 = sbr.rel (%p475) target = $region48
        $region47: #{tpu_custom_call.1} parent=43 // pred_region
          %s478 = sand.u32 %s108, 1
          %s479 = scalar_lea.sflag [#allocation3], %s478
          %s480 = sand.u32 %s108, 1
          %s481 = smul.addr %s480, 4
          %s482 = scalar_lea.vmem [#allocation2], %s481
          %484 = dma.done %s479, 64
        $region48: #{tpu_custom_call.1} parent=43 // pred_fallthru
          _
      $region44: #{tpu_custom_call.1} parent=5 // pred_fallthru
        _
    $region6: #{tpu_custom_call.1} parent=1 // loop_footer
      %s16 = sadd.s32 1, %s12
    $region7: #{tpu_custom_call.1} parent=1 // loop_footer_branch
      %11 = sbr.rel target = $region3
    $region8: #{tpu_custom_call.1} parent=1 // loop_exit
      _
    %485 = vsyncpa [#allocation3], 1
    %s486 = scalar_lea.sflag [#allocation3], 1
    %487 = vsyncpa %s486, 1

</llo_original>
